<compile_context>
chip_gen: v6e
topology: v6e:2x2x1
jax: 0.10.0
libtpu: 0.0.40
codegen_flags: <defaults>
</compile_context>

<pallas_src>
import functools

import jax
import jax.numpy as jnp
import numpy as np
from jax.experimental import pallas as pl
from jax.experimental.pallas import tpu as pltpu


# ----------------------------------------------------------------------------
# Shared helper: one nn.LSTM step from an all-zero (h, c) state.
# ----------------------------------------------------------------------------
def _lstm_step_zero_state(x, w_ih_t_bf16, b_f32):
    """x: (rows, in_dim) f32; w_ih_t_bf16: (in_dim, 4H) bf16; b: (1, 4H) f32.

    PyTorch gate order i, f, g, o.  h_prev = c_prev = 0, so W_hh and f*c_prev
    drop out.  MXU inputs bf16, accumulation f32.
    """
    H = w_ih_t_bf16.shape[1] // 4
    gates = jnp.dot(x.astype(jnp.bfloat16), w_ih_t_bf16,
                    preferred_element_type=jnp.float32) + b_f32
    i = jax.nn.sigmoid(gates[:, 0 * H:1 * H])
    g = jnp.tanh(gates[:, 2 * H:3 * H])
    o = jax.nn.sigmoid(gates[:, 3 * H:4 * H])
    c = i * g                       # f * c_prev == 0
    h = o * jnp.tanh(c)
    return h, c


# ----------------------------------------------------------------------------
# Pre-pass kernel: read-LSTM for ALL timesteps as one batched matmul.
# ----------------------------------------------------------------------------
def _read_prepass_kernel(x_ref, wih_ref, b_ref, o_ref):
    h, _ = _lstm_step_zero_state(x_ref[...], wih_ref[...], b_ref[...])
    o_ref[...] = h


def read_lstm_prepass(x2d, wih_t_bf16, b_f32, *, block_rows=512):
    n, hdim = x2d.shape
    bm = n if n <= block_rows else block_rows
    return pl.pallas_call(
        _read_prepass_kernel,
        out_shape=jax.ShapeDtypeStruct((n, hdim), jnp.float32),
        grid_spec=pltpu.PrefetchScalarGridSpec(
            num_scalar_prefetch=0,
            grid=(pl.cdiv(n, bm),),
            in_specs=[pl.BlockSpec((bm, hdim), lambda i: (i, 0)),
                      pl.BlockSpec(wih_t_bf16.shape, lambda i: (0, 0)),
                      pl.BlockSpec(b_f32.shape, lambda i: (0, 0))],
            out_specs=pl.BlockSpec((bm, hdim), lambda i: (i, 0)),
        ),
        compiler_params=pltpu.CompilerParams(
            dimension_semantics=("parallel",)),
    )(x2d, wih_t_bf16, b_f32)


# ----------------------------------------------------------------------------
# Recurrent kernel: attention over M, compose, write-LSTM, memory update.
# ----------------------------------------------------------------------------
def nse_kernel(*refs, n_layer):
    if n_layer > 1:
        (o_cur_ref, o_nxt_ref, emb_hbm_ref,
         cw1_ref, cw2_ref, cb_ref,
         w0_wih_ref, w0_b_ref, wr_wih_ref, wr_b_ref,
         out_ref, hn_ref, cn_ref,
         m_scr, s_scr, dma_sem) = refs
    else:
        (o_cur_ref, o_nxt_ref, emb_hbm_ref,
         cw1_ref, cw2_ref, cb_ref,
         w0_wih_ref, w0_b_ref,
         out_ref, hn_ref, cn_ref,
         m_scr, s_scr, dma_sem) = refs
        wr_wih_ref = wr_b_ref = None

    t = pl.program_id(0)
    n_t = pl.num_programs(0)

    # ---- t == 0: M_0 = embedd (DMA HBM -> VMEM) + scores for step 0 --------
    @pl.when(t == 0)
    def _():
        cp = pltpu.make_async_copy(emb_hbm_ref, m_scr, dma_sem)
        cp.start()
        cp.wait()
        o0 = o_cur_ref[0]                                      # (batch, H)
        s_scr[...] = jnp.sum(m_scr[...] * o0[None, :, :], axis=-1)

    o_t = o_cur_ref[0]                                         # (batch, H)

    # ---- attention weights from cached scores (softmax over srclen) --------
    s = s_scr[...]                                             # (srclen, batch)
    s = s - jnp.max(s, axis=0, keepdims=True)
    ez = jnp.exp(s)
    z = ez / jnp.sum(ez, axis=0, keepdims=True)
    zc = z[:, :, None]                                         # (srclen, batch, 1)

    M = m_scr[...]                                             # (srclen, batch, H)
    m_t = jnp.sum(zc * M, axis=0)                              # (batch, H)

    # ---- compose: Linear(cat(o_t, m_t)) as a split matmul -------------------
    c_t = (jnp.dot(o_t.astype(jnp.bfloat16), cw1_ref[...],
                   preferred_element_type=jnp.float32)
           + jnp.dot(m_t.astype(jnp.bfloat16), cw2_ref[...],
                     preferred_element_type=jnp.float32)
           + cb_ref[...])                                      # (batch, 2H)

    # ---- write: n_layer-deep LSTM step from zero state ----------------------
    h, c = _lstm_step_zero_state(c_t, w0_wih_ref[...], w0_b_ref[...])
    layer_states = [(h, c)]
    for layer in range(1, n_layer):                            # static unroll
        h, c = _lstm_step_zero_state(h, wr_wih_ref[layer - 1],
                                     wr_b_ref[layer - 1])
        layer_states.append((h, c))
    h_t = h                                                    # (batch, H)

    # ---- memory update fused with next-step scores --------------------------
    m_new = (1.0 - zc) * M + zc * h_t[None, :, :]
    m_scr[...] = m_new
    o_nx = o_nxt_ref[0]                                        # o_{t+1}
    s_scr[...] = jnp.sum(m_new * o_nx[None, :, :], axis=-1)

    out_ref[...] = h_t[None, :, :]                             # outputs[t]

    # ---- h_n / c_n only matter after the last timestep ----------------------
    @pl.when(t == n_t - 1)
    def _():
        for layer in range(n_layer):
            hn_ref[layer] = layer_states[layer][0]
            cn_ref[layer] = layer_states[layer][1]


def nse_forward_pallas(embedd, kp, n_layer):
    """embedd: (srclen, batch, n_unit) float32.  kp: dict of kernel params."""
    srclen, batch, H = embedd.shape
    embedd = embedd.astype(jnp.float32)

    # Read-LSTM hoisted out of the recurrence (one big batched matmul).
    o2d = read_lstm_prepass(embedd.reshape(srclen * batch, H),
                            kp["r_wih_t"], kp["r_b"])
    o = o2d.reshape(srclen, batch, H)
    # One padded extra timestep so the in-kernel "next step" lookahead at the
    # final grid step stays in bounds (its scores are computed but unused).
    o_pad = jnp.concatenate([o, jnp.zeros((1, batch, H), jnp.float32)], axis=0)

    kernel = functools.partial(nse_kernel, n_layer=n_layer)

    def full_spec(a):
        nd = a.ndim
        return pl.BlockSpec(a.shape, lambda t, _nd=nd: (0,) * _nd)

    step_spec = pl.BlockSpec((1, batch, H), lambda t: (t, 0, 0))
    next_spec = pl.BlockSpec((1, batch, H), lambda t: (t + 1, 0, 0))

    in_arrays = [o_pad, o_pad, embedd,
                 kp["c_w1_t"], kp["c_w2_t"], kp["c_b"],
                 kp["w0_wih_t"], kp["w0_b"]]
    in_specs = [step_spec, next_spec,
                pl.BlockSpec(memory_space=pl.ANY),      # embedd stays in HBM
                full_spec(kp["c_w1_t"]), full_spec(kp["c_w2_t"]),
                full_spec(kp["c_b"]),
                full_spec(kp["w0_wih_t"]), full_spec(kp["w0_b"])]
    if n_layer > 1:
        in_arrays += [kp["wr_wih_t"], kp["wr_b"]]
        in_specs += [full_spec(kp["wr_wih_t"]), full_spec(kp["wr_b"])]

    out_shape = (
        jax.ShapeDtypeStruct((srclen, batch, H), jnp.float32),   # outputs
        jax.ShapeDtypeStruct((n_layer, batch, H), jnp.float32),  # h_n
        jax.ShapeDtypeStruct((n_layer, batch, H), jnp.float32),  # c_n
    )
    out_specs = (
        pl.BlockSpec((1, batch, H), lambda t: (t, 0, 0)),
        pl.BlockSpec((n_layer, batch, H), lambda t: (0, 0, 0)),
        pl.BlockSpec((n_layer, batch, H), lambda t: (0, 0, 0)),
    )

    # Explicit VMEM budget: persistent M + scores scratch + resident weights/
    # outputs + double-buffered per-step blocks, with headroom; capped at the
    # smallest physical VMEM across generations (64 MiB on v7x).
    f32b = 4
    resident = (srclen * batch * H * f32b              # m_scr
                + srclen * batch * f32b                # s_scr
                + 2 * n_layer * batch * H * f32b)      # h_n + c_n
    weights = sum(int(a.size) * a.dtype.itemsize for a in in_arrays[3:])
    per_step = 3 * batch * H * f32b                    # o_cur, o_next, out blk
    needed = resident + weights + 4 * per_step
    vmem_limit = int(min(max(2 * needed, 8 << 20), 64 << 20))

    return pl.pallas_call(
        kernel,
        out_shape=out_shape,
        grid_spec=pltpu.PrefetchScalarGridSpec(
            num_scalar_prefetch=0,
            grid=(srclen,),
            in_specs=in_specs,
            out_specs=out_specs,
            scratch_shapes=[pltpu.VMEM((srclen, batch, H), jnp.float32),
                            pltpu.VMEM((srclen, batch), jnp.float32),
                            pltpu.SemaphoreType.DMA(())],
        ),
        compiler_params=pltpu.CompilerParams(
            dimension_semantics=("arbitrary",),
            vmem_limit_bytes=vmem_limit),
    )(*in_arrays)


# ----------------------------------------------------------------------------
# Pure-JAX reference (mirrors the PyTorch forward exactly, torch layouts, f32)
# ----------------------------------------------------------------------------
def _lstm_step_zero_ref(x, w_ih, w_hh, b_ih, b_hh):
    H = w_ih.shape[0] // 4
    gates = x @ w_ih.T + b_ih + b_hh          # h_prev == 0 -> W_hh unused
    i = jax.nn.sigmoid(gates[:, 0 * H:1 * H])
    g = jnp.tanh(gates[:, 2 * H:3 * H])
    o = jax.nn.sigmoid(gates[:, 3 * H:4 * H])
    c = i * g
    h = o * jnp.tanh(c)
    return h, c


def nse_forward_ref(embedd, raw, n_layer):
    srclen, batch, H = embedd.shape
    M = jnp.transpose(embedd, (1, 0, 2))      # (batch, srclen, H) torch layout
    outs, h_stack, c_stack = [], None, None
    for t in range(srclen):
        x_t = embedd[t]
        o_t, _ = _lstm_step_zero_ref(x_t, raw["r_wih"], raw["r_whh"],
                                     raw["r_bih"], raw["r_bhh"])
        z = jax.nn.softmax(jnp.einsum("bsh,bh->bs", M, o_t), axis=1)
        m_t = jnp.einsum("bs,bsh->bh", z, M)
        cat = jnp.concatenate([o_t, m_t], axis=1)
        c_t = cat @ raw["c_w"].T + raw["c_b"]
        h = c_t
        hs_h, hs_c = [], []
        for layer in range(n_layer):
            h, c = _lstm_step_zero_ref(h, raw["w_wih"][layer],
                                       raw["w_whh"][layer],
                                       raw["w_bih"][layer],
                                       raw["w_bhh"][layer])
            hs_h.append(h)
            hs_c.append(c)
        h_t = h
        M = (1.0 - z)[:, :, None] * M + z[:, :, None] * h_t[:, None, :]
        outs.append(h_t)
        h_stack, c_stack = jnp.stack(hs_h, 0), jnp.stack(hs_c, 0)
    return jnp.stack(outs, 0), h_stack, c_stack


# ----------------------------------------------------------------------------
# Parameter construction (deterministic, uniform(-0.1, 0.1) like the module)
# ----------------------------------------------------------------------------
def make_params(key, vocab, H, n_layer):
    def u(k, shape):
        return jax.random.uniform(k, shape, jnp.float32, -0.1, 0.1)

    keys = iter(jax.random.split(key, 64))
    raw = {
        "emb": u(next(keys), (vocab, H)),
        "r_wih": u(next(keys), (4 * H, H)),
        "r_whh": u(next(keys), (4 * H, H)),
        "r_bih": u(next(keys), (4 * H,)),
        "r_bhh": u(next(keys), (4 * H,)),
        "c_w": u(next(keys), (2 * H, 2 * H)),
        "c_b": u(next(keys), (2 * H,)),
        "w_wih": [], "w_whh": [], "w_bih": [], "w_bhh": [],
    }
    for layer in range(n_layer):
        in_dim = 2 * H if layer == 0 else H
        raw["w_wih"].append(u(next(keys), (4 * H, in_dim)))
        raw["w_whh"].append(u(next(keys), (4 * H, H)))
        raw["w_bih"].append(u(next(keys), (4 * H,)))
        raw["w_bhh"].append(u(next(keys), (4 * H,)))

    # Kernel-side parameters: transposed weights pre-cast to bf16 (MXU native),
    # fused biases kept in f32.
    kp = {
        "r_wih_t": raw["r_wih"].T.astype(jnp.bfloat16),               # (H, 4H)
        "r_b": (raw["r_bih"] + raw["r_bhh"]).reshape(1, 4 * H),
        "c_w1_t": raw["c_w"][:, :H].T.astype(jnp.bfloat16),           # (H, 2H)
        "c_w2_t": raw["c_w"][:, H:].T.astype(jnp.bfloat16),           # (H, 2H)
        "c_b": raw["c_b"].reshape(1, 2 * H),
        "w0_wih_t": raw["w_wih"][0].T.astype(jnp.bfloat16),           # (2H, 4H)
        "w0_b": (raw["w_bih"][0] + raw["w_bhh"][0]).reshape(1, 4 * H),
    }
    if n_layer > 1:
        kp["wr_wih_t"] = jnp.stack(
            [raw["w_wih"][l].T for l in range(1, n_layer)], 0).astype(jnp.bfloat16)
        kp["wr_b"] = jnp.stack(
            [(raw["w_bih"][l] + raw["w_bhh"][l]).reshape(1, 4 * H)
             for l in range(1, n_layer)], 0)
    return raw, kp


# ----------------------------------------------------------------------------
if __name__ == "__main__":
    srclen, batch = 8, 2
    n_unit = 32          # n_emb == n_unit (asserted by the module)
    n_layer = 2
    vocab = 50

    key = jax.random.PRNGKey(0)
    k_param, k_seq = jax.random.split(key)
    raw, kp = make_params(k_param, vocab, n_unit, n_layer)

    src_seqs = jax.random.randint(k_seq, (srclen, batch), 0, vocab)  # (srclen, batch)
    # Embedding lookup + dropout (identity in eval) done as glue in plain JAX.
    embedd = raw["emb"][src_seqs].astype(jnp.float32)                # (srclen, batch, n_unit)

    outputs, h_n, c_n = nse_forward_pallas(embedd, kp, n_layer)
    jax.block_until_ready((outputs, h_n, c_n))

    with jax.default_matmul_precision("highest"):
        ref_out, ref_h, ref_c = nse_forward_ref(embedd, raw, n_layer)
        jax.block_until_ready((ref_out, ref_h, ref_c))

    np.testing.assert_allclose(np.asarray(outputs), np.asarray(ref_out),
                               rtol=2e-2, atol=2e-3)
    np.testing.assert_allclose(np.asarray(h_n), np.asarray(ref_h),
                               rtol=2e-2, atol=2e-3)
    np.testing.assert_allclose(np.asarray(c_n), np.asarray(ref_c),
                               rtol=2e-2, atol=2e-3)

    print("KERNEL_OK")
</pallas_src>

<mosaic_0001>
module attributes {stable_mosaic.version = 11 : i64} {
  func.func @_read_prepass_kernel(%arg0: i32, %arg1: memref<16x32xf32, #tpu.memory_space<vmem>>, %arg2: memref<32x128xbf16, #tpu.memory_space<vmem>>, %arg3: memref<1x128xf32, #tpu.memory_space<vmem>>, %arg4: memref<16x32xf32, #tpu.memory_space<vmem>>) attributes {dimension_semantics = [#tpu.dimension_semantics<parallel>], iteration_bounds = array<i64: 1>, scalar_prefetch = 0 : i64, scratch_operands = 0 : i64, tpu.core_type = #tpu.core_type<tc>, window_params = [{transform_indices = @transform_0, window_bounds = array<i64: 16, 32>}, {pipeline_mode = #tpu.pipeline_mode<synchronous>, transform_indices = @transform_1, window_bounds = array<i64: 32, 128>}, {pipeline_mode = #tpu.pipeline_mode<synchronous>, transform_indices = @transform_2, window_bounds = array<i64: 1, 128>}, {transform_indices = @transform_3, window_bounds = array<i64: 16, 32>}]} {
    %c0 = arith.constant 0 : index
    %c0_0 = arith.constant 0 : index
    %0 = vector.load %arg1[%c0, %c0_0] : memref<16x32xf32, #tpu.memory_space<vmem>>, vector<16x32xf32>
    %c0_1 = arith.constant 0 : index
    %c0_2 = arith.constant 0 : index
    %1 = vector.load %arg2[%c0_1, %c0_2] : memref<32x128xbf16, #tpu.memory_space<vmem>>, vector<32x128xbf16>
    %c0_3 = arith.constant 0 : index
    %c0_4 = arith.constant 0 : index
    %2 = vector.load %arg3[%c0_3, %c0_4] : memref<1x128xf32, #tpu.memory_space<vmem>>, vector<1x128xf32>
    %3 = arith.truncf %0 : vector<16x32xf32> to vector<16x32xbf16>
    %cst = arith.constant dense<0.000000e+00> : vector<16x128xf32>
    %4 = tpu.matmul %3, %1, %cst {dimension_numbers = #tpu.dot_dimension_numbers<[1], [0], [0], [1], [0, 0, 1, 1], [], []>} : vector<16x32xbf16>, vector<32x128xbf16>, vector<16x128xf32> -> vector<16x128xf32>
    %5 = vector.broadcast %2 : vector<1x128xf32> to vector<16x128xf32>
    %6 = arith.addf %4, %5 : vector<16x128xf32>
    %7 = vector.extract_strided_slice %6 {offsets = [0, 0], sizes = [16, 32], strides = [1, 1]} : vector<16x128xf32> to vector<16x32xf32>
    %8 = arith.negf %7 : vector<16x32xf32>
    %9 = math.exp %8 : vector<16x32xf32>
    %cst_5 = arith.constant 1.000000e+00 : f32
    %10 = vector.broadcast %cst_5 : f32 to vector<16x32xf32>
    %11 = arith.addf %10, %9 : vector<16x32xf32>
    %12 = arith.divf %10, %11 : vector<16x32xf32>
    %13 = vector.extract_strided_slice %6 {offsets = [0, 64], sizes = [16, 32], strides = [1, 1]} : vector<16x128xf32> to vector<16x32xf32>
    %14 = math.tanh %13 : vector<16x32xf32>
    %15 = vector.extract_strided_slice %6 {offsets = [0, 96], sizes = [16, 32], strides = [1, 1]} : vector<16x128xf32> to vector<16x32xf32>
    %16 = arith.negf %15 : vector<16x32xf32>
    %17 = math.exp %16 : vector<16x32xf32>
    %cst_6 = arith.constant 1.000000e+00 : f32
    %18 = vector.broadcast %cst_6 : f32 to vector<16x32xf32>
    %19 = arith.addf %18, %17 : vector<16x32xf32>
    %20 = arith.divf %18, %19 : vector<16x32xf32>
    %21 = arith.mulf %12, %14 : vector<16x32xf32>
    %22 = math.tanh %21 : vector<16x32xf32>
    %23 = arith.mulf %20, %22 : vector<16x32xf32>
    %c0_7 = arith.constant 0 : index
    %c0_8 = arith.constant 0 : index
    %24 = vector.load %arg4[%c0_7, %c0_8] : memref<16x32xf32, #tpu.memory_space<vmem>>, vector<16x32xf32>
    tpu.vector_store %arg4[%c0_7, %c0_8], %23 {strides = array<i32>} : memref<16x32xf32, #tpu.memory_space<vmem>>, vector<16x32xf32>,
    return
  }
  func.func @transform_0(%arg0: i32) -> (i32, i32) {
    %c0_i32 = arith.constant 0 : i32
    %c0_i32_0 = arith.constant 0 : i32
    return %arg0, %c0_i32 : i32, i32
  }
  func.func @transform_1(%arg0: i32) -> (i32, i32) {
    %c0_i32 = arith.constant 0 : i32
    %c0_i32_0 = arith.constant 0 : i32
    %c0_i32_1 = arith.constant 0 : i32
    return %c0_i32, %c0_i32_0 : i32, i32
  }
  func.func @transform_2(%arg0: i32) -> (i32, i32) {
    %c0_i32 = arith.constant 0 : i32
    %c0_i32_0 = arith.constant 0 : i32
    %c0_i32_1 = arith.constant 0 : i32
    return %c0_i32, %c0_i32_0 : i32, i32
  }
  func.func @transform_3(%arg0: i32) -> (i32, i32) {
    %c0_i32 = arith.constant 0 : i32
    %c0_i32_0 = arith.constant 0 : i32
    return %arg0, %c0_i32 : i32, i32
  }
}

</mosaic_0001>

<llo_original>
// kernel: tpu_custom_call.1
$region0: #{tpu_custom_call.1}
  #allocation0 [shape = 'u32[]', space=smem, size = 0x4, offset = 0x4, fixed_abs, tag = 'smem constant byte address 0x4 - core index']
  #allocation1 [shape = 'u32[144,128]{1,0:T(1,128)}', space=vmem, size = 0x12000, scoped, tag = 'internal scratch']
  %s0 = inlined_call_operand.hbm [shape: f32[16,32], index: 0, kind: input, shape index: {}]
  %s1 = inlined_call_operand.hbm [shape: bf16[32,128], index: 1, kind: input, shape index: {}]
  %s2 = inlined_call_operand.vmem [shape: f32[1,128], index: 2, kind: input, shape index: {}]
  %s3 = inlined_call_operand.hbm [shape: f32[16,32], index: 3, kind: output, shape index: {}]
  %s4 = sld [smem:[#allocation0]]
  $region30: #{tpu_custom_call.1} parent=0
    _
  %s6 = ssub.s32 1, %s4
  %s7 = scalar_select 0, %s6, %s4
  $region1: #{tpu_custom_call.1} parent=0
    #allocation2 [shape = 'u8[8192]{0}', space=vmem, size = 0x2000, scoped, tag = 'input window, operand 0, single buffered']
    #allocation3 [shape = 's32[1]{0}', space=sflag, size = 0x4, scoped, tag = 'scoped memory for tpu_custom_call.1']
    #allocation4 [shape = 's32[1]{0}', space=sflag, size = 0x4, scoped, tag = 'scoped memory for tpu_custom_call.1']
    #allocation5 [shape = 'u8[8192]{0}', space=vmem, size = 0x2000, scoped, tag = 'input window, operand 1, single buffered']
    #allocation6 [shape = 's32[1]{0}', space=sflag, size = 0x4, scoped, tag = 'scoped memory for tpu_custom_call.1']
    #allocation7 [shape = 'u8[8192]{0}', space=vmem, size = 0x2000, scoped, tag = 'output window, operand 0, single buffered']
    %8 = vsyncpa [#allocation3], 0
    %9 = vsyncpa [#allocation6], 0
    %10 = vsyncpa [#allocation4], 0
    // Predicated region
    $region2: #{tpu_custom_call.1} parent=1 // pred_check
      _
    $region3: #{tpu_custom_call.1} parent=1 // pred_check_branch
      %12 = sbr.rel (0) target = $region5
    $region4: #{tpu_custom_call.1} parent=1 // pred_region
      %s14 = ssub.s32 256, 256
      %15 = vsyncadd [#allocation3], %s14
      %s16 = sshll.u32 [#allocation2], 4
      %s17 = int_to_ptr.vmem [resolvable:$true] %s16
      %22 = dma.hbm_to_vmem [thread:$0]  %s0, 256, %s17, [#allocation3], 128, 128, 8
    $region5: #{tpu_custom_call.1} parent=1 // pred_fallthru
      _
    // Predicated region
    $region6: #{tpu_custom_call.1} parent=1 // pred_check
      _
    $region7: #{tpu_custom_call.1} parent=1 // pred_check_branch
      %24 = sbr.rel (0) target = $region9
    $region8: #{tpu_custom_call.1} parent=1 // pred_region
      %s26 = ssub.s32 256, 256
      %27 = vsyncadd [#allocation6], %s26
      %s28 = sshll.u32 [#allocation5], 4
      %s29 = int_to_ptr.vmem [resolvable:$true] %s28
      %34 = dma.hbm_to_vmem [thread:$0]  %s1, 256, %s29, [#allocation6], 64, 64, 4
    $region9: #{tpu_custom_call.1} parent=1 // pred_fallthru
      _
    // Predicated region
    $region10: #{tpu_custom_call.1} parent=1 // pred_check
      _
    $region11: #{tpu_custom_call.1} parent=1 // pred_check_branch
      %36 = sbr.rel (0) target = $region13
    $region12: #{tpu_custom_call.1} parent=1 // pred_region
      _
    $region13: #{tpu_custom_call.1} parent=1 // pred_fallthru
      _
    // Predicated region
    $region14: #{tpu_custom_call.1} parent=1 // pred_check
      _
    $region15: #{tpu_custom_call.1} parent=1 // pred_check_branch
      %38 = sbr.rel (0) target = $region17
    $region16: #{tpu_custom_call.1} parent=1 // pred_region
      %39 = dma.done [#allocation3], 256
    $region17: #{tpu_custom_call.1} parent=1 // pred_fallthru
      _
    // Predicated region
    $region18: #{tpu_custom_call.1} parent=1 // pred_check
      _
    $region19: #{tpu_custom_call.1} parent=1 // pred_check_branch
      %41 = sbr.rel (0) target = $region21
    $region20: #{tpu_custom_call.1} parent=1 // pred_region
      %42 = dma.done [#allocation6], 256
    $region21: #{tpu_custom_call.1} parent=1 // pred_fallthru
      _
    %v44 = vld [vmem:[#allocation2] sm:$0xff]
    %v45 = vld [vmem:[#allocation2 + $0x8] sm:$0xff]
    %v46 = vld [vmem:[#allocation5] sm:$0xf]
    %v47 = vld [vmem:[#allocation5 + $0x4] sm:$0xf]
    %v48 = vld [vmem:[#allocation5 + $0x8] sm:$0xf]
    %v49 = vld [vmem:[#allocation5 + $0xc] sm:$0xf]
    %v50 = vld [vmem:[%s2] sm:$0x1]
    %v51 = vpack.c.bf16 %v45, %v44
    %v53 = vlaneseq
    %v54 = vshrl.u32 %v53, 7
    %v55 = vsub.s32 0, %v54
    %v56 = vrot.slane %v50, %v55
    %v62 = vunpack.c.l.b16 %v46
    %v63 = vunpack.c.l.b16 %v47
    %v64 = vunpack.c.l.b16 %v48
    %v65 = vunpack.c.l.b16 %v49
    %v66 = vpack.c.b16 %v63, %v62
    %v67 = vpack.c.b16 %v65, %v64
    %vm70 = vcmask 261120
    %v72 = vsel %vm70, %v51, 0
    %74 = vmatprep.subr.bf16.mxu0 0
    %75 = vmatpush1.bf16.msra.mxu0 0
    %76 = vmatprep.subr.bf16.mxu0 0
    %77 = vmatpush1.bf16.msra.mxu0 0
    %78 = vmatprep.subr.bf16.mxu0 0
    %79 = vmatpush1.bf16.msra.mxu0 0
    %80 = vmatprep.subr.bf16.mxu0 0
    %81 = vmatpush1.bf16.msra.mxu0 0
    %82 = vmatprep.subr.bf16.mxu0 0
    %83 = vmatpush1.bf16.msra.mxu0 0
    %84 = vmatprep.subr.bf16.mxu0 0
    %85 = vmatpush1.bf16.msra.mxu0 0
    %86 = vmatprep.subr.bf16.mxu0 0
    %87 = vmatpush1.bf16.msra.mxu0 %v67
    %88 = vmatprep.subr.bf16.mxu0 0
    %89 = vmatpush1.bf16.msra.mxu0 %v66
    %90 = vmatprep.subr.bf16.mxu0 0
    %91 = vmatpush2.bf16.msra.mxu0 0
    %92 = vmatprep.subr.bf16.mxu0 0
    %93 = vmatpush2.bf16.msra.mxu0 0
    %94 = vmatprep.subr.bf16.mxu0 0
    %95 = vmatpush2.bf16.msra.mxu0 0
    %96 = vmatprep.subr.bf16.mxu0 0
    %97 = vmatpush2.bf16.msra.mxu0 0
    %98 = vmatprep.subr.bf16.mxu0 0
    %99 = vmatpush2.bf16.msra.mxu0 0
    %100 = vmatprep.subr.bf16.mxu0 0
    %101 = vmatpush2.bf16.msra.mxu0 0
    %102 = vmatprep.subr.bf16.mxu0 0
    %103 = vmatpush2.bf16.msra.mxu0 0
    %104 = vmatprep.subr.bf16.mxu0 0
    %105 = vmatpush2.bf16.msra.mxu0 0
    %106 = vmatprep.mubr.bf16.mxu0 0
    %107 = vmatmul.mubr.bf16.gmra.mxu0 %v72
    %v108 = vpop.f32.mrf.mxu0
    %v109 = vadd.f32 %v56, %v108
    %v110 = vpop.f32.mrf.mxu0
    %v111 = vpop.f32.mrf.mxu0
    %v112 = vadd.f32 %v56, %v111
    %v113 = vpop.f32.mrf.mxu0
    %114 = vdwg.mxu0
    %v115 = vxor.u32 %v109, 2147483648
    %v116 = vxor.u32 %v112, 2147483648
    %v117 = vmul.f32 %v115, 1.442695
    %v118 = vpow.pop %v117
    %v119 = vmul.f32 %v116, 1.442695
    %v120 = vpow.pop %v119
    %v121 = vadd.f32 %v118, 1.0
    %v122 = vadd.f32 %v120, 1.0
    %v123 = vrcp.pop %v121
    %v124 = vmul.f32 1.0, %v123
    %v125 = vrcp.pop %v122
    %v126 = vmul.f32 1.0, %v125
    %v127 = vtanh.pop %v109
    %v128 = vtanh.pop %v112
    %131 = vrot.lane.b32.xlu0 %v127, 64
    %v132 = vpop.permute.xlu0 %131
    %133 = vrot.lane.b32.xlu0 %v128, 64
    %v134 = vpop.permute.xlu0 %133
    %v137 = vmul.f32 %v124, %v132
    %v138 = vmul.f32 %v126, %v134
    %v139 = vtanh.pop %v137
    %v140 = vtanh.pop %v138
    %143 = vrot.lane.b32.xlu0 %v139, 96
    %v144 = vpop.permute.xlu0 %143
    %145 = vrot.lane.b32.xlu0 %v140, 96
    %v146 = vpop.permute.xlu0 %145
    %v149 = vmul.f32 %v124, %v144
    %v150 = vmul.f32 %v126, %v146
    %153 = vrot.lane.b32.xlu0 %v149, 32
    %v154 = vpop.permute.xlu0 %153
    %155 = vrot.lane.b32.xlu0 %v150, 32
    %v156 = vpop.permute.xlu0 %155
    %159 = vst.msk [vmem:[#allocation7] sm:$0xff] %vm70, %v154
    %160 = vst.msk [vmem:[#allocation7 + $0x8] sm:$0xff] %vm70, %v156
    // Predicated region
    $region22: #{tpu_custom_call.1} parent=1 // pred_check
      _
    $region23: #{tpu_custom_call.1} parent=1 // pred_check_branch
      %162 = sbr.rel (0) target = $region25
    $region24: #{tpu_custom_call.1} parent=1 // pred_region
      %s164 = ssub.s32 256, 256
      %165 = vsyncadd [#allocation4], %s164
      %s166 = sshll.u32 [#allocation7], 4
      %s167 = int_to_ptr.vmem [resolvable:$true] %s166
      %172 = dma.vmem_to_hbm [thread:$0]  %s167, 256, %s3, [#allocation4], 128, 128, 8
    $region25: #{tpu_custom_call.1} parent=1 // pred_fallthru
      _
    // Predicated region
    $region26: #{tpu_custom_call.1} parent=1 // pred_check
      _
    $region27: #{tpu_custom_call.1} parent=1 // pred_check_branch
      %174 = sbr.rel (0) target = $region29
    $region28: #{tpu_custom_call.1} parent=1 // pred_region
      %175 = dma.done [#allocation4], 256
    $region29: #{tpu_custom_call.1} parent=1 // pred_fallthru
      _
    %176 = vsyncpa [#allocation3], 1
    %177 = vsyncpa [#allocation6], 1
    %178 = vsyncpa [#allocation4], 1

</llo_original>
